<compile_context>
chip_gen: v7x
topology: tpu7x:2x2x1
jax: 0.10.0
libtpu: 0.0.40
codegen_flags: <defaults>
</compile_context>

<pallas_src>
import jax
import jax.numpy as jnp
from jax.experimental import pallas as pl
from jax.experimental.pallas import tpu as pltpu


# ---------------------------------------------------------------------------
# Exact (erf-based) GELU, matching torch.nn.GELU() default.
# erf via Abramowitz & Stegun 7.1.26 (max abs err ~1.5e-7) using only
# exp/mul/add/where, which lower cleanly on the TPU VPU/EUP.
# ---------------------------------------------------------------------------
def _gelu_exact(x):
    z = x * jnp.float32(0.7071067811865476)          # x / sqrt(2)
    a = jnp.abs(z)
    t = 1.0 / (1.0 + 0.3275911 * a)
    poly = t * (0.254829592
                + t * (-0.284496736
                       + t * (1.421413741
                              + t * (-1.453152027
                                     + t * 1.061405429))))
    erf_abs = 1.0 - poly * jnp.exp(-a * a)
    erf = jnp.where(z >= 0, erf_abs, -erf_abs)
    return 0.5 * x * (1.0 + erf)


# ---------------------------------------------------------------------------
# Fused MLP kernel: one grid step = one (tm, th) slice of the hidden layer.
#   h  = GELU(x_tile @ W1[:, th] + b1[th])          (stays in VMEM)
#   acc += h @ W2[th, :]                            (f32 accumulator over th)
#   out = acc + b2                                  (on last hidden tile)
# ---------------------------------------------------------------------------
def _mlp_kernel(x_ref, w1_ref, b1_ref, w2_ref, b2_ref, o_ref, acc_ref):
    j = pl.program_id(1)

    @pl.when(j == 0)
    def _():
        acc_ref[...] = jnp.zeros_like(acc_ref)

    # fc1 slice (+bias) and GELU, all in f32 registers / VMEM
    h = jnp.dot(x_ref[...], w1_ref[...], preferred_element_type=jnp.float32)
    h = h + b1_ref[...].astype(jnp.float32)
    h = _gelu_exact(h)

    # fc2 partial product, accumulated across the hidden grid axis
    acc_ref[...] += jnp.dot(h.astype(x_ref.dtype), w2_ref[...],
                            preferred_element_type=jnp.float32)

    @pl.when(j == pl.num_programs(1) - 1)
    def _():
        o_ref[...] = (acc_ref[...]
                      + b2_ref[...].astype(jnp.float32)).astype(o_ref.dtype)


def _pick_tile(dim, target, align):
    """Largest `align`-aligned divisor of `dim` that is <= target (or full dim)."""
    if dim <= target:
        return dim
    t = (target // align) * align
    while t >= align:
        if dim % t == 0:
            return t
        t -= align
    return dim  # no aligned divisor: fall back to the whole dimension


# ---------------------------------------------------------------------------
# Wrapper: x (..., C) -> (..., C)
# params: w1 (C, H), b1 (H,), w2 (H, C), b2 (C,)   (y = x @ W + b convention)
# ---------------------------------------------------------------------------
def mlp_forward(x, params, *, block_m=256, block_h=512):
    orig_shape = x.shape
    C = orig_shape[-1]
    H = params["w1"].shape[1]
    M = 1
    for d in orig_shape[:-1]:
        M *= d
    x2 = x.reshape(M, C)

    tm = _pick_tile(M, block_m, 8)      # token tile   (sublane-aligned)
    th = _pick_tile(H, block_h, 128)    # hidden tile  (lane-aligned)
    grid = (M // tm, H // th)

    out = pl.pallas_call(
        _mlp_kernel,
        out_shape=jax.ShapeDtypeStruct((M, C), x.dtype),
        grid_spec=pltpu.PrefetchScalarGridSpec(
            num_scalar_prefetch=0,
            grid=grid,
            in_specs=[
                pl.BlockSpec((tm, C), lambda i, j: (i, 0)),   # x tile
                pl.BlockSpec((C, th), lambda i, j: (0, j)),   # W1 slice
                pl.BlockSpec((1, th), lambda i, j: (0, j)),   # b1 slice
                pl.BlockSpec((th, C), lambda i, j: (j, 0)),   # W2 slice
                pl.BlockSpec((1, C), lambda i, j: (0, 0)),    # b2
            ],
            out_specs=pl.BlockSpec((tm, C), lambda i, j: (i, 0)),
            scratch_shapes=[pltpu.VMEM((tm, C), jnp.float32)],
        ),
        compiler_params=pltpu.CompilerParams(
            dimension_semantics=("parallel", "arbitrary")),
    )(x2, params["w1"], params["b1"].reshape(1, H),
      params["w2"], params["b2"].reshape(1, C))

    return out.reshape(orig_shape)


# ---------------------------------------------------------------------------
# Pure-JAX reference mirroring the PyTorch forward (eval mode: dropout = id)
# ---------------------------------------------------------------------------
def mlp_reference(x, params):
    h = x @ params["w1"] + params["b1"]
    h = jax.nn.gelu(h, approximate=False)            # torch nn.GELU() default
    return h @ params["w2"] + params["b2"]


if __name__ == "__main__":
    B, N, C, H = 2, 64, 32, 256                      # small test shapes

    key = jax.random.PRNGKey(0)
    k_x, k_w1, k_w2 = jax.random.split(key, 3)

    x = jax.random.normal(k_x, (B, N, C), dtype=jnp.float32)
    params = {
        "w1": jax.random.normal(k_w1, (C, H), dtype=jnp.float32) * 0.05,
        "b1": jnp.linspace(-0.1, 0.1, H, dtype=jnp.float32),
        "w2": jax.random.normal(k_w2, (H, C), dtype=jnp.float32) * 0.05,
        "b2": jnp.linspace(-0.05, 0.05, C, dtype=jnp.float32),
    }

    # block_m/block_h chosen so the tiny test still exercises a (2, 2) grid:
    # parallel M tiling plus the hidden-axis accumulator path.
    out = mlp_forward(x, params, block_m=64, block_h=128)
    out = jax.block_until_ready(out)

    ref = mlp_reference(x, params)
    assert out.shape == (B, N, C)
    assert jnp.allclose(out, ref, atol=1e-3, rtol=1e-3), float(
        jnp.max(jnp.abs(out - ref)))

    print("KERNEL_OK")
</pallas_src>

<mosaic_0001>
module attributes {stable_mosaic.version = 11 : i64} {
  func.func @_mlp_kernel(%arg0: i32, %arg1: i32, %arg2: memref<64x32xf32, #tpu.memory_space<vmem>>, %arg3: memref<32x128xf32, #tpu.memory_space<vmem>>, %arg4: memref<1x128xf32, #tpu.memory_space<vmem>>, %arg5: memref<128x32xf32, #tpu.memory_space<vmem>>, %arg6: memref<1x32xf32, #tpu.memory_space<vmem>>, %arg7: memref<64x32xf32, #tpu.memory_space<vmem>>, %arg8: memref<64x32xf32, #tpu.memory_space<vmem>>) attributes {dimension_semantics = [#tpu.dimension_semantics<parallel>, #tpu.dimension_semantics<arbitrary>], iteration_bounds = array<i64: 2, 2>, scalar_prefetch = 0 : i64, scratch_operands = 1 : i64, tpu.core_type = #tpu.core_type<tc>, window_params = [{transform_indices = @transform_0, window_bounds = array<i64: 64, 32>}, {transform_indices = @transform_1, window_bounds = array<i64: 32, 128>}, {transform_indices = @transform_2, window_bounds = array<i64: 1, 128>}, {transform_indices = @transform_3, window_bounds = array<i64: 128, 32>}, {pipeline_mode = #tpu.pipeline_mode<synchronous>, transform_indices = @transform_4, window_bounds = array<i64: 1, 32>}, {transform_indices = @transform_5, window_bounds = array<i64: 64, 32>}]} {
    %c0_i32 = arith.constant 0 : i32
    %0 = arith.cmpi eq, %arg1, %c0_i32 : i32
    %1 = arith.extui %0 : i1 to i32
    %c0_i32_0 = arith.constant 0 : i32
    %2 = arith.cmpi ne, %1, %c0_i32_0 : i32
    scf.if %2 {
      %cst_29 = arith.constant 0.000000e+00 : f32
      %57 = vector.broadcast %cst_29 : f32 to vector<64x32xf32>
      %c0_30 = arith.constant 0 : index
      %c0_31 = arith.constant 0 : index
      %58 = vector.load %arg8[%c0_30, %c0_31] : memref<64x32xf32, #tpu.memory_space<vmem>>, vector<64x32xf32>
      tpu.vector_store %arg8[%c0_30, %c0_31], %57 {strides = array<i32>} : memref<64x32xf32, #tpu.memory_space<vmem>>, vector<64x32xf32>,
    } else {
    }
    %c0 = arith.constant 0 : index
    %c0_1 = arith.constant 0 : index
    %3 = vector.load %arg2[%c0, %c0_1] : memref<64x32xf32, #tpu.memory_space<vmem>>, vector<64x32xf32>
    %c0_2 = arith.constant 0 : index
    %c0_3 = arith.constant 0 : index
    %4 = vector.load %arg3[%c0_2, %c0_3] : memref<32x128xf32, #tpu.memory_space<vmem>>, vector<32x128xf32>
    %cst = arith.constant dense<0.000000e+00> : vector<64x128xf32>
    %5 = tpu.matmul %3, %4, %cst {dimension_numbers = #tpu.dot_dimension_numbers<[1], [0], [0], [1], [0, 0, 1, 1], [], []>} : vector<64x32xf32>, vector<32x128xf32>, vector<64x128xf32> -> vector<64x128xf32>
    %c0_4 = arith.constant 0 : index
    %c0_5 = arith.constant 0 : index
    %6 = vector.load %arg4[%c0_4, %c0_5] : memref<1x128xf32, #tpu.memory_space<vmem>>, vector<1x128xf32>
    %7 = vector.broadcast %6 : vector<1x128xf32> to vector<64x128xf32>
    %8 = arith.addf %5, %7 : vector<64x128xf32>
    %cst_6 = arith.constant 0.707106769 : f32
    %9 = vector.broadcast %cst_6 : f32 to vector<64x128xf32>
    %10 = arith.mulf %8, %9 : vector<64x128xf32>
    %11 = math.absf %10 : vector<64x128xf32>
    %cst_7 = arith.constant 0.327591091 : f32
    %12 = vector.broadcast %cst_7 : f32 to vector<64x128xf32>
    %13 = arith.mulf %12, %11 : vector<64x128xf32>
    %cst_8 = arith.constant 1.000000e+00 : f32
    %14 = vector.broadcast %cst_8 : f32 to vector<64x128xf32>
    %15 = arith.addf %14, %13 : vector<64x128xf32>
    %cst_9 = arith.constant 1.000000e+00 : f32
    %16 = vector.broadcast %cst_9 : f32 to vector<64x128xf32>
    %17 = arith.divf %16, %15 : vector<64x128xf32>
    %cst_10 = arith.constant 1.06140542 : f32
    %18 = vector.broadcast %cst_10 : f32 to vector<64x128xf32>
    %19 = arith.mulf %17, %18 : vector<64x128xf32>
    %cst_11 = arith.constant -1.45315206 : f32
    %20 = vector.broadcast %cst_11 : f32 to vector<64x128xf32>
    %21 = arith.addf %20, %19 : vector<64x128xf32>
    %22 = arith.mulf %17, %21 : vector<64x128xf32>
    %cst_12 = arith.constant 1.42141378 : f32
    %23 = vector.broadcast %cst_12 : f32 to vector<64x128xf32>
    %24 = arith.addf %23, %22 : vector<64x128xf32>
    %25 = arith.mulf %17, %24 : vector<64x128xf32>
    %cst_13 = arith.constant -0.284496725 : f32
    %26 = vector.broadcast %cst_13 : f32 to vector<64x128xf32>
    %27 = arith.addf %26, %25 : vector<64x128xf32>
    %28 = arith.mulf %17, %27 : vector<64x128xf32>
    %cst_14 = arith.constant 0.254829586 : f32
    %29 = vector.broadcast %cst_14 : f32 to vector<64x128xf32>
    %30 = arith.addf %29, %28 : vector<64x128xf32>
    %31 = arith.mulf %17, %30 : vector<64x128xf32>
    %cst_15 = arith.constant 0.000000e+00 : f32
    %32 = vector.broadcast %cst_15 : f32 to vector<64x128xf32>
    %33 = arith.subf %32, %11 : vector<64x128xf32>
    %34 = arith.mulf %33, %11 : vector<64x128xf32>
    %35 = math.exp %34 : vector<64x128xf32>
    %36 = arith.mulf %31, %35 : vector<64x128xf32>
    %cst_16 = arith.constant 1.000000e+00 : f32
    %37 = vector.broadcast %cst_16 : f32 to vector<64x128xf32>
    %38 = arith.subf %37, %36 : vector<64x128xf32>
    %cst_17 = arith.constant 0.000000e+00 : f32
    %39 = vector.broadcast %cst_17 : f32 to vector<64x128xf32>
    %40 = arith.cmpf oge, %10, %39 : vector<64x128xf32>
    %cst_18 = arith.constant 0.000000e+00 : f32
    %41 = vector.broadcast %cst_18 : f32 to vector<64x128xf32>
    %42 = arith.subf %41, %38 : vector<64x128xf32>
    %43 = arith.select %40, %38, %42 : vector<64x128xi1>, vector<64x128xf32>
    %cst_19 = arith.constant 5.000000e-01 : f32
    %44 = vector.broadcast %cst_19 : f32 to vector<64x128xf32>
    %45 = arith.mulf %44, %8 : vector<64x128xf32>
    %cst_20 = arith.constant 1.000000e+00 : f32
    %46 = vector.broadcast %cst_20 : f32 to vector<64x128xf32>
    %47 = arith.addf %46, %43 : vector<64x128xf32>
    %48 = arith.mulf %45, %47 : vector<64x128xf32>
    %c0_21 = arith.constant 0 : index
    %c0_22 = arith.constant 0 : index
    %49 = vector.load %arg8[%c0_21, %c0_22] : memref<64x32xf32, #tpu.memory_space<vmem>>, vector<64x32xf32>
    %c0_23 = arith.constant 0 : index
    %c0_24 = arith.constant 0 : index
    %50 = vector.load %arg5[%c0_23, %c0_24] : memref<128x32xf32, #tpu.memory_space<vmem>>, vector<128x32xf32>
    %cst_25 = arith.constant dense<0.000000e+00> : vector<64x32xf32>
    %51 = tpu.matmul %48, %50, %cst_25 {dimension_numbers = #tpu.dot_dimension_numbers<[1], [0], [0], [1], [0, 0, 1, 1], [], []>} : vector<64x128xf32>, vector<128x32xf32>, vector<64x32xf32> -> vector<64x32xf32>
    %52 = arith.addf %49, %51 : vector<64x32xf32>
    %c0_26 = arith.constant 0 : index
    %c0_27 = arith.constant 0 : index
    %53 = vector.load %arg8[%c0_26, %c0_27] : memref<64x32xf32, #tpu.memory_space<vmem>>, vector<64x32xf32>
    tpu.vector_store %arg8[%c0_26, %c0_27], %52 {strides = array<i32>} : memref<64x32xf32, #tpu.memory_space<vmem>>, vector<64x32xf32>,
    %c1_i32 = arith.constant 1 : i32
    %54 = arith.cmpi eq, %arg1, %c1_i32 : i32
    %55 = arith.extui %54 : i1 to i32
    %c0_i32_28 = arith.constant 0 : i32
    %56 = arith.cmpi ne, %55, %c0_i32_28 : i32
    scf.if %56 {
      %c0_29 = arith.constant 0 : index
      %c0_30 = arith.constant 0 : index
      %57 = vector.load %arg8[%c0_29, %c0_30] : memref<64x32xf32, #tpu.memory_space<vmem>>, vector<64x32xf32>
      %c0_31 = arith.constant 0 : index
      %c0_32 = arith.constant 0 : index
      %58 = vector.load %arg6[%c0_31, %c0_32] : memref<1x32xf32, #tpu.memory_space<vmem>>, vector<1x32xf32>
      %59 = vector.broadcast %58 : vector<1x32xf32> to vector<64x32xf32>
      %60 = arith.addf %57, %59 : vector<64x32xf32>
      %c0_33 = arith.constant 0 : index
      %c0_34 = arith.constant 0 : index
      %61 = vector.load %arg7[%c0_33, %c0_34] : memref<64x32xf32, #tpu.memory_space<vmem>>, vector<64x32xf32>
      tpu.vector_store %arg7[%c0_33, %c0_34], %60 {strides = array<i32>} : memref<64x32xf32, #tpu.memory_space<vmem>>, vector<64x32xf32>,
    } else {
    }
    return
  }
  func.func @transform_0(%arg0: i32, %arg1: i32) -> (i32, i32) {
    %c0_i32 = arith.constant 0 : i32
    %c0_i32_0 = arith.constant 0 : i32
    return %arg0, %c0_i32 : i32, i32
  }
  func.func @transform_1(%arg0: i32, %arg1: i32) -> (i32, i32) {
    %c0_i32 = arith.constant 0 : i32
    %c0_i32_0 = arith.constant 0 : i32
    return %c0_i32, %arg1 : i32, i32
  }
  func.func @transform_2(%arg0: i32, %arg1: i32) -> (i32, i32) {
    %c0_i32 = arith.constant 0 : i32
    %c0_i32_0 = arith.constant 0 : i32
    return %c0_i32, %arg1 : i32, i32
  }
  func.func @transform_3(%arg0: i32, %arg1: i32) -> (i32, i32) {
    %c0_i32 = arith.constant 0 : i32
    %c0_i32_0 = arith.constant 0 : i32
    return %arg1, %c0_i32 : i32, i32
  }
  func.func @transform_4(%arg0: i32, %arg1: i32) -> (i32, i32) {
    %c0_i32 = arith.constant 0 : i32
    %c0_i32_0 = arith.constant 0 : i32
    %c0_i32_1 = arith.constant 0 : i32
    return %c0_i32, %c0_i32_0 : i32, i32
  }
  func.func @transform_5(%arg0: i32, %arg1: i32) -> (i32, i32) {
    %c0_i32 = arith.constant 0 : i32
    %c0_i32_0 = arith.constant 0 : i32
    return %arg0, %c0_i32 : i32, i32
  }
}

</mosaic_0001>

<llo_original>
// kernel: tpu_custom_call.1
$region0: #{tpu_custom_call.1}
  #allocation0 [shape = 'u32[]', space=smem, size = 0x4, offset = 0x4, fixed_abs, tag = 'smem constant byte address 0x4 - core index']
  #allocation1 [shape = 'u32[144,128]{1,0:T(1,128)}', space=vmem, size = 0x12000, scoped, tag = 'internal scratch']
  #allocation2 [shape = 'f32[64,32]{1,0:T(8,128)}', space=vmem, size = 0x8000, scoped, tag = 'scratch operand']
  %s0 = inlined_call_operand.vmem [shape: f32[128,32], index: 0, kind: input, shape index: {}]
  %s1 = inlined_call_operand.vmem [shape: f32[32,256], index: 1, kind: input, shape index: {}]
  %s2 = inlined_call_operand.vmem [shape: f32[1,256], index: 2, kind: input, shape index: {}]
  %s3 = inlined_call_operand.vmem [shape: f32[256,32], index: 3, kind: input, shape index: {}]
  %s4 = inlined_call_operand.vmem [shape: f32[1,32], index: 4, kind: input, shape index: {}]
  %s5 = inlined_call_operand.vmem [shape: f32[128,32], index: 5, kind: output, shape index: {}]
  %s6 = sld [smem:[#allocation0]]
  $region99: #{tpu_custom_call.1} parent=0
    _
  %s8 = ssub.s32 1, %s6
  %s9 = scalar_select 0, %s8, %s6
  $region1: #{tpu_custom_call.1} parent=0
    #allocation3 [shape = 'u8[32768]{0}', space=vmem, size = 0x8000, scoped, tag = 'input window, operand 1']
    loop: start=0, step=1, limit=6
    $region2: #{tpu_custom_call.1} parent=1 // loop_pre_header
      _
    $region3: #{tpu_custom_call.1} parent=1 // loop_header
      %s11 = sphi 0, %s15
      %p12 = scmp.ge.s32.totalorder %s11, 6
      %s18 = sphi 0, %s30
      %s19 = sphi 0, %s26
      %s20 = sphi 0, %s18
      %s21 = sphi 0, %s19
      %s22 = sphi 0, %s20
      %s23 = sphi 0, %s21
      %s33 = sphi 0, %s35
      %s36 = sphi 0, %s33
      %s37 = sphi 0, %s36
      %s53 = sphi 0, %s37
      %s59 = sphi 0, %s61
      %s62 = sphi 0, %s59
      %s63 = sphi 0, %s62
      %s79 = sphi 0, %s63
      %s85 = sphi 0, %s87
      %s88 = sphi 0, %s85
      %s89 = sphi 0, %s88
      %s105 = sphi 0, %s89
      %s111 = sphi 0, %s113
      %s114 = sphi 0, %s111
      %s115 = sphi 0, %s114
      %s131 = sphi 0, %s115
      %s135 = sphi 0, %s135
      %s137 = sphi 0, %s135
      %s138 = sphi 0, %s137
      %s152 = sphi 0, %s138
      %s158 = sphi 0, %s160
      %s161 = sphi 0, %s158
      %s162 = sphi 0, %s161
      %s178 = sphi 0, %s162
    $region4: #{tpu_custom_call.1} parent=1 // loop_header_branch
      %14 = sbr.rel (%p12) target = $region8
    $region5: #{tpu_custom_call.1} parent=1 // loop_body
      %s16 = ssub.s32 %s11, 1
      %s17 = ssub.s32 %s11, 2
      %s24 = sadd.s32 1, %s19
      %p25 = scmp.ge.s32.totalorder %s24, 2
      %s26 = scalar_select %p25, 0, %s24
      %s27 = sadd.s32 1, %s18
      %s28 = scalar_select %p25, %s27, %s18
      %p29 = scmp.ge.s32.totalorder %s28, 2
      %s30 = scalar_select %p29, 0, %s28
      %s31 = ssub.s32 %s18, %s30
      %p32 = scmp.eq.s32.totalorder %s31, 0
      %s34 = sadd.s32 %s33, 1
      %s35 = scalar_select %p32, %s33, %s34
      %p38 = pneg %p32
      %p39 = scmp.eq.s32.totalorder %s11, 3
      %p40 = por %p38, %p39
      %p41 = scmp.ne.s32.totalorder %s33, %s36
      %p42 = scmp.eq.s32.totalorder %s11, 0
      %p43 = por %p41, %p42
      %p44 = scmp.ne.s32.totalorder %s33, %s36
      %p45 = scmp.eq.s32.totalorder %s16, 3
      %p46 = por %p44, %p45
      %p47 = scmp.ne.s32.totalorder %s36, %s37
      %p48 = scmp.eq.s32.totalorder %s16, 0
      %p49 = por %p47, %p48
      %p50 = scmp.ne.s32.totalorder %s36, %s37
      %p51 = scmp.eq.s32.totalorder %s17, 3
      %p52 = por %p50, %p51
      %p54 = scmp.ne.s32.totalorder %s37, %s53
      %p55 = scmp.eq.s32.totalorder %s17, 0
      %p56 = por %p54, %p55
      %s57 = ssub.s32 %s19, %s26
      %p58 = scmp.eq.s32.totalorder %s57, 0
      %s60 = sadd.s32 %s59, 1
      %s61 = scalar_select %p58, %s59, %s60
      %p64 = pneg %p58
      %p65 = scmp.eq.s32.totalorder %s11, 3
      %p66 = por %p64, %p65
      %p67 = scmp.ne.s32.totalorder %s59, %s62
      %p68 = scmp.eq.s32.totalorder %s11, 0
      %p69 = por %p67, %p68
      %p70 = scmp.ne.s32.totalorder %s59, %s62
      %p71 = scmp.eq.s32.totalorder %s16, 3
      %p72 = por %p70, %p71
      %p73 = scmp.ne.s32.totalorder %s62, %s63
      %p74 = scmp.eq.s32.totalorder %s16, 0
      %p75 = por %p73, %p74
      %p76 = scmp.ne.s32.totalorder %s62, %s63
      %p77 = scmp.eq.s32.totalorder %s17, 3
      %p78 = por %p76, %p77
      %p80 = scmp.ne.s32.totalorder %s63, %s79
      %p81 = scmp.eq.s32.totalorder %s17, 0
      %p82 = por %p80, %p81
      %s83 = ssub.s32 %s19, %s26
      %p84 = scmp.eq.s32.totalorder %s83, 0
      %s86 = sadd.s32 %s85, 1
      %s87 = scalar_select %p84, %s85, %s86
      %p90 = pneg %p84
      %p91 = scmp.eq.s32.totalorder %s11, 3
      %p92 = por %p90, %p91
      %p93 = scmp.ne.s32.totalorder %s85, %s88
      %p94 = scmp.eq.s32.totalorder %s11, 0
      %p95 = por %p93, %p94
      %p96 = scmp.ne.s32.totalorder %s85, %s88
      %p97 = scmp.eq.s32.totalorder %s16, 3
      %p98 = por %p96, %p97
      %p99 = scmp.ne.s32.totalorder %s88, %s89
      %p100 = scmp.eq.s32.totalorder %s16, 0
      %p101 = por %p99, %p100
      %p102 = scmp.ne.s32.totalorder %s88, %s89
      %p103 = scmp.eq.s32.totalorder %s17, 3
      %p104 = por %p102, %p103
      %p106 = scmp.ne.s32.totalorder %s89, %s105
      %p107 = scmp.eq.s32.totalorder %s17, 0
      %p108 = por %p106, %p107
      %s109 = ssub.s32 %s19, %s26
      %p110 = scmp.eq.s32.totalorder %s109, 0
      %s112 = sadd.s32 %s111, 1
      %s113 = scalar_select %p110, %s111, %s112
      %p116 = pneg %p110
      %p117 = scmp.eq.s32.totalorder %s11, 3
      %p118 = por %p116, %p117
      %p119 = scmp.ne.s32.totalorder %s111, %s114
      %p120 = scmp.eq.s32.totalorder %s11, 0
      %p121 = por %p119, %p120
      %p122 = scmp.ne.s32.totalorder %s111, %s114
      %p123 = scmp.eq.s32.totalorder %s16, 3
      %p124 = por %p122, %p123
      %p125 = scmp.ne.s32.totalorder %s114, %s115
      %p126 = scmp.eq.s32.totalorder %s16, 0
      %p127 = por %p125, %p126
      %p128 = scmp.ne.s32.totalorder %s114, %s115
      %p129 = scmp.eq.s32.totalorder %s17, 3
      %p130 = por %p128, %p129
      %p132 = scmp.ne.s32.totalorder %s115, %s131
      %p133 = scmp.eq.s32.totalorder %s17, 0
      %p134 = por %p132, %p133
      %s136 = sadd.s32 %s135, 1
      %p139 = scmp.eq.s32.totalorder %s11, 3
      %p140 = scmp.ne.s32.totalorder %s135, %s137
      %p141 = scmp.eq.s32.totalorder %s11, 0
      %p142 = por %p140, %p141
      %p143 = scmp.ne.s32.totalorder %s135, %s137
      %p144 = scmp.eq.s32.totalorder %s16, 3
      %p145 = por %p143, %p144
      %p146 = scmp.ne.s32.totalorder %s137, %s138
      %p147 = scmp.eq.s32.totalorder %s16, 0
      %p148 = por %p146, %p147
      %p149 = scmp.ne.s32.totalorder %s137, %s138
      %p150 = scmp.eq.s32.totalorder %s17, 3
      %p151 = por %p149, %p150
      %p153 = scmp.ne.s32.totalorder %s138, %s152
      %p154 = scmp.eq.s32.totalorder %s17, 0
      %p155 = por %p153, %p154
      %s156 = ssub.s32 %s18, %s30
      %p157 = scmp.eq.s32.totalorder %s156, 0
      %s159 = sadd.s32 %s158, 1
      %s160 = scalar_select %p157, %s158, %s159
      %p163 = pneg %p157
      %p164 = scmp.eq.s32.totalorder %s11, 3
      %p165 = por %p163, %p164
      %p166 = scmp.ne.s32.totalorder %s158, %s161
      %p167 = scmp.eq.s32.totalorder %s11, 0
      %p168 = por %p166, %p167
      %p169 = scmp.ne.s32.totalorder %s158, %s161
      %p170 = scmp.eq.s32.totalorder %s16, 3
      %p171 = por %p169, %p170
      %p172 = scmp.ne.s32.totalorder %s161, %s162
      %p173 = scmp.eq.s32.totalorder %s16, 0
      %p174 = por %p172, %p173
      %p175 = scmp.ne.s32.totalorder %s161, %s162
      %p176 = scmp.eq.s32.totalorder %s17, 3
      %p177 = por %p175, %p176
      %p179 = scmp.ne.s32.totalorder %s162, %s178
      %p180 = scmp.eq.s32.totalorder %s17, 0
      %p181 = por %p179, %p180
      %p182 = scmp.le.s32.totalorder 1, %s11
      %p183 = scmp.lt.s32.totalorder %s11, 5
      %p184 = pnand %p182, %p183
      %p185 = pneg %p184
      // Predicated region
      $region9: #{tpu_custom_call.1} parent=5 // pred_check
        _
      $region10: #{tpu_custom_call.1} parent=5 // pred_check_branch
        %187 = sbr.rel (%p184) target = $region12
      $region11: #{tpu_custom_call.1} parent=5 // pred_region
        %s188 = ssub.s32 %s11, 1
        // Predicated region
        $region13: #{tpu_custom_call.1} parent=11 // pred_check
          %p189 = pneg %p148
        $region14: #{tpu_custom_call.1} parent=11 // pred_check_branch
          %191 = sbr.rel (%p189) target = $region16
        $region15: #{tpu_custom_call.1} parent=11 // pred_region
          _
        $region16: #{tpu_custom_call.1} parent=11 // pred_fallthru
          _
      $region12: #{tpu_custom_call.1} parent=5 // pred_fallthru
        _
      %p192 = scmp.lt.s32.totalorder %s11, 4
      // Predicated region
      $region17: #{tpu_custom_call.1} parent=5 // pred_check
        %p193 = pneg %p192
      $region18: #{tpu_custom_call.1} parent=5 // pred_check_branch
        %195 = sbr.rel (%p193) target = $region20
      $region19: #{tpu_custom_call.1} parent=5 // pred_region
        // Predicated region
        $region21: #{tpu_custom_call.1} parent=19 // pred_check
          %p196 = pneg %p43
        $region22: #{tpu_custom_call.1} parent=19 // pred_check_branch
          %198 = sbr.rel (%p196) target = $region24
        $region23: #{tpu_custom_call.1} parent=19 // pred_region
          %s199 = smul.u32 8, %s18
          %p200 = scmp.lt.s32.totalorder %s199, 15
          %s201 = scalar_select %p200, %s199, 15
          %s202 = smul.addr %s201, 8
          %s203 = scalar_lea.vmem %s0, %s202
          %s204 = smul.u32 8, %s18
        $region24: #{tpu_custom_call.1} parent=19 // pred_fallthru
          _
        // Predicated region
        $region25: #{tpu_custom_call.1} parent=19 // pred_check
          %p205 = pneg %p69
        $region26: #{tpu_custom_call.1} parent=19 // pred_check_branch
          %207 = sbr.rel (%p205) target = $region28
        $region27: #{tpu_custom_call.1} parent=19 // pred_region
          %s208 = sand.u32 %s59, 1
          %s209 = sand.u32 %s59, 1
          %s210 = smul.addr %s209, 32
          %s211 = scalar_lea.vmem [#allocation3], %s210
          %s212 = smul.addr %s19, 8
          %s213 = scalar_lea.vmem %s1, %s212
          // Predicated region
          $region29: #{tpu_custom_call.1} parent=27 // pred_check
            _
          $region30: #{tpu_custom_call.1} parent=27 // pred_check_branch
            %215 = sbr.rel (0) target = $region32
          $region31: #{tpu_custom_call.1} parent=27 // pred_region
            // Predicated region
            $region33: #{tpu_custom_call.1} parent=31 // pred_check
              _
            $region34: #{tpu_custom_call.1} parent=31 // pred_check_branch
              %217 = sbr.rel (0) target = $region36
            $region35: #{tpu_custom_call.1} parent=31 // pred_region
              // Predicated region
              $region48: #{tpu_custom_call.1} parent=35 // pred_check
                _
              $region49: #{tpu_custom_call.1} parent=35 // pred_check_branch
                %238 = sbr.rel (0) target = $region51
              $region50: #{tpu_custom_call.1} parent=35 // pred_region
                loop: start=0, step=1, limit=1
                $region52: #{tpu_custom_call.1} parent=50 // loop_pre_header
                  _
                $region53: #{tpu_custom_call.1} parent=50 // loop_header
                  %s240 = sphi 0, %s244
                  %p241 = scmp.ge.s32.totalorder %s240, 1
                  %s245 = sphi %s213, %s213
                  %s246 = sphi %s211, %s211
                $region54: #{tpu_custom_call.1} parent=50 // loop_header_branch
                  %243 = sbr.rel (%p241) target = $region58
                $region55: #{tpu_custom_call.1} parent=50 // loop_body
                  %v247 = vld [vmem:[%s245] sm:$0xff]
                  %248 = vst [vmem:[%s246] sm:$0xff] %v247
                  %v249 = vld [vmem:[%s245 + $0x10] sm:$0xff]
                  %250 = vst [vmem:[%s246 + $0x8] sm:$0xff] %v249
                  %v251 = vld [vmem:[%s245 + $0x20] sm:$0xff]
                  %252 = vst [vmem:[%s246 + $0x10] sm:$0xff] %v251
                  %v253 = vld [vmem:[%s245 + $0x30] sm:$0xff]
                  %254 = vst [vmem:[%s246 + $0x18] sm:$0xff] %v253
                $region56: #{tpu_custom_call.1} parent=50 // loop_footer
                  %s244 = sadd.s32 1, %s240
                $region57: #{tpu_custom_call.1} parent=50 // loop_footer_branch
                  %239 = sbr.rel target = $region53
                $region58: #{tpu_custom_call.1} parent=50 // loop_exit
                  _
              $region51: #{tpu_custom_call.1} parent=35 // pred_fallthru
                _
              // Predicated region
              $region59: #{tpu_custom_call.1} parent=35 // pred_check
                _
              $region60: #{tpu_custom_call.1} parent=35 // pred_check_branch
                %256 = sbr.rel target = $region62
              $region61: #{tpu_custom_call.1} parent=35 // pred_region
                _
              $region62: #{tpu_custom_call.1} parent=35 // pred_fallthru
                _
            $region36: #{tpu_custom_call.1} parent=31 // pred_fallthru
              _
            // Predicated region
            $region37: #{tpu_custom_call.1} parent=31 // pred_check
              _
            $region38: #{tpu_custom_call.1} parent=31 // pred_check_branch
              %219 = sbr.rel target = $region40
            $region39: #{tpu_custom_call.1} parent=31 // pred_region
              loop: start=0, step=1, limit=1
              $region41: #{tpu_custom_call.1} parent=39 // loop_pre_header
                _
              $region42: #{tpu_custom_call.1} parent=39 // loop_header
                %s222 = sphi 0, %s226
                %p223 = scmp.ge.s32.totalorder %s222, 1
                %s227 = sphi %s213, %s213
                %s228 = sphi %s211, %s211
              $region43: #{tpu_custom_call.1} parent=39 // loop_header_branch
                %225 = sbr.rel (%p223) target = $region47
              $region44: #{tpu_custom_call.1} parent=39 // loop_body
                %v229 = vld [vmem:[%s227] sm:$0xff]
                %230 = vst [vmem:[%s228] sm:$0xff] %v229
                %v231 = vld [vmem:[%s227 + $0x10] sm:$0xff]
                %232 = vst [vmem:[%s228 + $0x8] sm:$0xff] %v231
                %v233 = vld [vmem:[%s227 + $0x20] sm:$0xff]
                %234 = vst [vmem:[%s228 + $0x10] sm:$0xff] %v233
                %v235 = vld [vmem:[%s227 + $0x30] sm:$0xff]
                %236 = vst [vmem:[%s228 + $0x18] sm:$0xff] %v235
              $region45: #{tpu_custom_call.1} parent=39 // loop_footer
                %s226 = sadd.s32 1, %s222
              $region46: #{tpu_custom_call.1} parent=39 // loop_footer_branch
                %221 = sbr.rel target = $region42
              $region47: #{tpu_custom_call.1} parent=39 // loop_exit
                _
            $region40: #{tpu_custom_call.1} parent=31 // pred_fallthru
              _
          $region32: #{tpu_custom_call.1} parent=27 // pred_fallthru
            _
          %257 = vnop
        $region28: #{tpu_custom_call.1} parent=19 // pred_fallthru
          _
        // Predicated region
        $region63: #{tpu_custom_call.1} parent=19 // pred_check
          %p258 = pneg %p95
        $region64: #{tpu_custom_call.1} parent=19 // pred_check_branch
          %260 = sbr.rel (%p258) target = $region66
        $region65: #{tpu_custom_call.1} parent=19 // pred_region
          %p261 = scmp.lt.s32.totalorder %s19, 1
          %s262 = scalar_select %p261, %s19, 1
          %s263 = scalar_lea.vmem %s2, %s262
        $region66: #{tpu_custom_call.1} parent=19 // pred_fallthru
          _
        // Predicated region
        $region67: #{tpu_custom_call.1} parent=19 // pred_check
          %p264 = pneg %p121
        $region68: #{tpu_custom_call.1} parent=19 // pred_check_branch
          %266 = sbr.rel (%p264) target = $region70
        $region69: #{tpu_custom_call.1} parent=19 // pred_region
          %s267 = smul.u32 16, %s19
          %p268 = scmp.lt.s32.totalorder %s267, 31
          %s269 = scalar_select %p268, %s267, 31
          %s270 = smul.addr %s269, 8
          %s271 = scalar_lea.vmem %s3, %s270
          %s272 = smul.u32 16, %s19
        $region70: #{tpu_custom_call.1} parent=19 // pred_fallthru
          _
      $region20: #{tpu_custom_call.1} parent=5 // pred_fallthru
        _
      %p273 = scmp.le.s32.totalorder 1, %s11
      %p274 = scmp.lt.s32.totalorder %s11, 5
      %p275 = pnand %p273, %p274
      %p276 = pneg %p275
      // Predicated region
      $region71: #{tpu_custom_call.1} parent=5 // pred_check
        _
      $region72: #{tpu_custom_call.1} parent=5 // pred_check_branch
        %278 = sbr.rel (%p275) target = $region74
      $region73: #{tpu_custom_call.1} parent=5 // pred_region
        %s279 = ssub.s32 %s11, 1
        %s280 = sand.u32 %s62, 1
        %s281 = sand.u32 %s62, 1
        %s282 = smul.addr %s281, 32
        %s283 = scalar_lea.vmem [#allocation3], %s282
        // Predicated region
        $region75: #{tpu_custom_call.1} parent=73 // pred_check
          %p284 = pneg %p75
        $region76: #{tpu_custom_call.1} parent=73 // pred_check_branch
          %286 = sbr.rel (%p284) target = $region78
        $region77: #{tpu_custom_call.1} parent=73 // pred_region
          _
        $region78: #{tpu_custom_call.1} parent=73 // pred_fallthru
          _
        %s287 = smul.u32 8, %s20
        %p288 = scmp.lt.s32.totalorder %s287, 15
        %s289 = scalar_select %p288, %s287, 15
        %s290 = smul.addr %s289, 8
        %s291 = scalar_lea.vmem %s0, %s290
        %p292 = pneg %p49
        %p293 = pneg %p46
        %s294 = sand.u32 %s62, 1
        %s295 = sand.u32 %s62, 1
        %s296 = smul.addr %s295, 32
        %s297 = scalar_lea.vmem [#allocation3], %s296
        %p298 = pneg %p75
        %p299 = pneg %p72
        %p300 = scmp.lt.s32.totalorder %s21, 1
        %s301 = scalar_select %p300, %s21, 1
        %s302 = scalar_lea.vmem %s2, %s301
        %p303 = pneg %p101
        %p304 = pneg %p98
        %s305 = smul.u32 16, %s21
        %p306 = scmp.lt.s32.totalorder %s305, 31
        %s307 = scalar_select %p306, %s305, 31
        %s308 = smul.addr %s307, 8
        %s309 = scalar_lea.vmem %s3, %s308
        %p310 = pneg %p127
        %p311 = pneg %p124
        %p312 = pneg %p148
        %p313 = pneg %p145
        %p314 = pneg %p174
        %p315 = pneg %p171
        %s316 = smul.u32 8, %s20
        %p317 = scmp.lt.s32.totalorder %s316, 15
        %s318 = scalar_select %p317, %s316, 15
        %s319 = smul.addr %s318, 8
        %s320 = scalar_lea.vmem %s5, %s319
        %s321 = smul.u32 8, %s20
        %p322 = scmp.lt.s32.totalorder %s321, 15
        %s323 = scalar_select %p322, %s321, 15
        %s324 = smul.addr %s323, 8
        %s325 = scalar_lea.vmem %s0, %s324
        %s326 = smul.u32 8, %s20
        %p327 = scmp.lt.s32.totalorder %s21, 1
        %s328 = scalar_select %p327, %s21, 1
        %s329 = scalar_lea.vmem %s2, %s328
        %s330 = smul.u32 16, %s21
        %p331 = scmp.lt.s32.totalorder %s330, 31
        %s332 = scalar_select %p331, %s330, 31
        %s333 = smul.addr %s332, 8
        %s334 = scalar_lea.vmem %s3, %s333
        %s335 = smul.u32 16, %s21
        %s336 = smul.u32 8, %s20
        %p337 = scmp.lt.s32.totalorder %s336, 15
        %s338 = scalar_select %p337, %s336, 15
        %s339 = smul.addr %s338, 8
        %s340 = scalar_lea.vmem %s5, %s339
        %s341 = smul.u32 8, %s20
        %p342 = scmp.eq.s32.totalorder %s21, 0
        // Predicated region
        $region79: #{tpu_custom_call.1} parent=73 // pred_check
          %p343 = pneg %p342
        $region80: #{tpu_custom_call.1} parent=73 // pred_check_branch
          %345 = sbr.rel (%p343) target = $region82
        $region81: #{tpu_custom_call.1} parent=73 // pred_region
          %vm346 = vcmask 261120
          %347 = vst.msk [vmem:[#allocation2] sm:$0xff] %vm346, 0.0
          %348 = vst.msk [vmem:[#allocation2 + $0x8] sm:$0xff] %vm346, 0.0
          %349 = vst.msk [vmem:[#allocation2 + $0x10] sm:$0xff] %vm346, 0.0
          %350 = vst.msk [vmem:[#allocation2 + $0x18] sm:$0xff] %vm346, 0.0
          %351 = vst.msk [vmem:[#allocation2 + $0x20] sm:$0xff] %vm346, 0.0
          %352 = vst.msk [vmem:[#allocation2 + $0x28] sm:$0xff] %vm346, 0.0
          %353 = vst.msk [vmem:[#allocation2 + $0x30] sm:$0xff] %vm346, 0.0
          %354 = vst.msk [vmem:[#allocation2 + $0x38] sm:$0xff] %vm346, 0.0
        $region82: #{tpu_custom_call.1} parent=73 // pred_fallthru
          _
        %v355 = vld [vmem:[%s325] sm:$0xff]
        %v356 = vld [vmem:[%s325 + $0x8] sm:$0xff]
        %v357 = vld [vmem:[%s325 + $0x10] sm:$0xff]
        %v358 = vld [vmem:[%s325 + $0x18] sm:$0xff]
        %v359 = vld [vmem:[%s325 + $0x20] sm:$0xff]
        %v360 = vld [vmem:[%s325 + $0x28] sm:$0xff]
        %v361 = vld [vmem:[%s325 + $0x30] sm:$0xff]
        %v362 = vld [vmem:[%s325 + $0x38] sm:$0xff]
        %v363 = vld [vmem:[%s283] sm:$0xff]
        %v364 = vld [vmem:[%s283 + $0x8] sm:$0xff]
        %v365 = vld [vmem:[%s283 + $0x10] sm:$0xff]
        %v366 = vld [vmem:[%s283 + $0x18] sm:$0xff]
        %v367 = vld [vmem:[%s329] sm:$0x1]
        %v369 = vlaneseq
        %v370 = vshrl.u32 %v369, 7
        %v371 = vsub.s32 0, %v370
        %v372 = vrot.slane %v367, %v371
        %vm374 = vcmask 261120
        %v376 = vsel %vm374, %v355, 0
        %v379 = vsel %vm374, %v356, 0
        %v382 = vsel %vm374, %v357, 0
        %v385 = vsel %vm374, %v358, 0
        %v388 = vsel %vm374, %v359, 0
        %v391 = vsel %vm374, %v360, 0
        %v394 = vsel %vm374, %v361, 0
        %v397 = vsel %vm374, %v362, 0
        %399 = vmatprep.subr.mxu0 0.0
        %400 = vmatpush1.msra.mxu0 %v363
        %401 = vmatprep.subr.mxu0 0.0
        %402 = vmatpush1.msra.mxu0 %v364
        %403 = vmatprep.subr.mxu0 0.0
        %404 = vmatpush1.msra.mxu0 %v365
        %405 = vmatprep.subr.mxu0 0.0
        %406 = vmatpush1.msra.mxu0 %v366
        %407 = vmatprep.subr.mxu0 0.0
        %408 = vmatpush1.msra.mxu0 0.0
        %409 = vmatprep.subr.mxu0 0.0
        %410 = vmatpush1.msra.mxu0 0.0
        %411 = vmatprep.subr.mxu0 0.0
        %412 = vmatpush1.msra.mxu0 0.0
        %413 = vmatprep.subr.mxu0 0.0
        %414 = vmatpush1.msra.mxu0 0.0
        %415 = vmatprep.subr.mxu0 0.0
        %416 = vmatpush1.msra.mxu0 0.0
        %417 = vmatprep.subr.mxu0 0.0
        %418 = vmatpush1.msra.mxu0 0.0
        %419 = vmatprep.subr.mxu0 0.0
        %420 = vmatpush1.msra.mxu0 0.0
        %421 = vmatprep.subr.mxu0 0.0
        %422 = vmatpush1.msra.mxu0 0.0
        %423 = vmatprep.subr.mxu0 0.0
        %424 = vmatpush1.msra.mxu0 0.0
        %425 = vmatprep.subr.mxu0 0.0
        %426 = vmatpush1.msra.mxu0 0.0
        %427 = vmatprep.subr.mxu0 0.0
        %428 = vmatpush1.msra.mxu0 0.0
        %429 = vmatprep.subr.mxu0 0.0
        %430 = vmatpush1.msra.mxu0 0.0
        %431 = vmatprep.subr.mxu0 0.0
        %432 = vmatpush1.msra.mxu0 0.0
        %433 = vmatprep.subr.mxu0 0.0
        %434 = vmatpush1.msra.mxu0 0.0
        %435 = vmatprep.subr.mxu0 0.0
        %436 = vmatpush1.msra.mxu0 0.0
        %437 = vmatprep.subr.mxu0 0.0
        %438 = vmatpush1.msra.mxu0 0.0
        %439 = vmatprep.subr.mxu0 0.0
        %440 = vmatpush1.msra.mxu0 0.0
        %441 = vmatprep.subr.mxu0 0.0
        %442 = vmatpush1.msra.mxu0 0.0
        %443 = vmatprep.subr.mxu0 0.0
        %444 = vmatpush1.msra.mxu0 0.0
        %445 = vmatprep.subr.mxu0 0.0
        %446 = vmatpush1.msra.mxu0 0.0
        %447 = vmatprep.subr.mxu0 0.0
        %448 = vmatpush1.msra.mxu0 0.0
        %449 = vmatprep.subr.mxu0 0.0
        %450 = vmatpush1.msra.mxu0 0.0
        %451 = vmatprep.subr.mxu0 0.0
        %452 = vmatpush1.msra.mxu0 0.0
        %453 = vmatprep.subr.mxu0 0.0
        %454 = vmatpush1.msra.mxu0 0.0
        %455 = vmatprep.subr.mxu0 0.0
        %456 = vmatpush1.msra.mxu0 0.0
        %457 = vmatprep.subr.mxu0 0.0
        %458 = vmatpush1.msra.mxu0 0.0
        %459 = vmatprep.subr.mxu0 0.0
        %460 = vmatpush1.msra.mxu0 0.0
        %461 = vmatprep.subr.mxu0 0.0
        %462 = vmatpush1.msra.mxu0 0.0
        %463 = vmatprep.mubr.f32.mxu0 0.0
        %464 = vmatmul.mubr.f32.gmra.mrb[0].mxu0 %v376
        %v465 = vpop.f32.mrb[0].mxu0
        %v466 = vadd.f32 %v372, %v465
        %v467 = vpop.f32.mrb[0].mxu0
        %468 = vmatprep.mubr.f32.mxu0 0.0
        %469 = vmatmul.mubr.f32.gmra.mrb[0].mxu0 %v379
        %v470 = vpop.f32.mrb[0].mxu0
        %v471 = vadd.f32 %v372, %v470
        %v472 = vpop.f32.mrb[0].mxu0
        %473 = vmatprep.mubr.f32.mxu0 0.0
        %474 = vmatmul.mubr.f32.gmra.mrb[0].mxu0 %v382
        %v475 = vpop.f32.mrb[0].mxu0
        %v476 = vadd.f32 %v372, %v475
        %v477 = vpop.f32.mrb[0].mxu0
        %478 = vmatprep.mubr.f32.mxu0 0.0
        %479 = vmatmul.mubr.f32.gmra.mrb[0].mxu0 %v385
        %v480 = vpop.f32.mrb[0].mxu0
        %v481 = vadd.f32 %v372, %v480
        %v482 = vpop.f32.mrb[0].mxu0
        %483 = vmatprep.mubr.f32.mxu0 0.0
        %484 = vmatmul.mubr.f32.gmra.mrb[0].mxu0 %v388
        %v485 = vpop.f32.mrb[0].mxu0
        %v486 = vadd.f32 %v372, %v485
        %v487 = vpop.f32.mrb[0].mxu0
        %488 = vmatprep.mubr.f32.mxu0 0.0
        %489 = vmatmul.mubr.f32.gmra.mrb[0].mxu0 %v391
        %v490 = vpop.f32.mrb[0].mxu0
        %v491 = vadd.f32 %v372, %v490
        %v492 = vpop.f32.mrb[0].mxu0
        %493 = vmatprep.mubr.f32.mxu0 0.0
        %494 = vmatmul.mubr.f32.gmra.mrb[0].mxu0 %v394
        %v495 = vpop.f32.mrb[0].mxu0
        %v496 = vadd.f32 %v372, %v495
        %v497 = vpop.f32.mrb[0].mxu0
        %498 = vmatprep.mubr.f32.mxu0 0.0
        %499 = vmatmul.mubr.f32.gmra.mrb[0].mxu0 %v397
        %v500 = vpop.f32.mrb[0].mxu0
        %v501 = vadd.f32 %v372, %v500
        %v502 = vpop.f32.mrb[0].mxu0
        %503 = vdwg.mxu0
        %v504 = vmul.f32 %v466, 0.70710677
        %v505 = vmul.f32 %v471, 0.70710677
        %v506 = vmul.f32 %v476, 0.70710677
        %v507 = vmul.f32 %v481, 0.70710677
        %v508 = vmul.f32 %v486, 0.70710677
        %v509 = vmul.f32 %v491, 0.70710677
        %v510 = vmul.f32 %v496, 0.70710677
        %v511 = vmul.f32 %v501, 0.70710677
        %v512 = vand.u32 2147483647, %v504
        %v513 = vand.u32 2147483647, %v505
        %v514 = vand.u32 2147483647, %v506
        %v515 = vand.u32 2147483647, %v507
        %v516 = vand.u32 2147483647, %v508
        %v517 = vand.u32 2147483647, %v509
        %v518 = vand.u32 2147483647, %v510
        %v519 = vand.u32 2147483647, %v511
        %v520 = vmul.f32 %v512, 0.3275911
        %v521 = vmul.f32 %v513, 0.3275911
        %v522 = vmul.f32 %v514, 0.3275911
        %v523 = vmul.f32 %v515, 0.3275911
        %v524 = vmul.f32 %v516, 0.3275911
        %v525 = vmul.f32 %v517, 0.3275911
        %v526 = vmul.f32 %v518, 0.3275911
        %v527 = vmul.f32 %v519, 0.3275911
        %v528 = vadd.f32 %v520, 1.0
        %v529 = vadd.f32 %v521, 1.0
        %v530 = vadd.f32 %v522, 1.0
        %v531 = vadd.f32 %v523, 1.0
        %v532 = vadd.f32 %v524, 1.0
        %v533 = vadd.f32 %v525, 1.0
        %v534 = vadd.f32 %v526, 1.0
        %v535 = vadd.f32 %v527, 1.0
        %v536 = vrcp.pop %v528
        %v537 = vmul.f32 1.0, %v536
        %v538 = vrcp.pop %v529
        %v539 = vmul.f32 1.0, %v538
        %v540 = vrcp.pop %v530
        %v541 = vmul.f32 1.0, %v540
        %v542 = vrcp.pop %v531
        %v543 = vmul.f32 1.0, %v542
        %v544 = vrcp.pop %v532
        %v545 = vmul.f32 1.0, %v544
        %v546 = vrcp.pop %v533
        %v547 = vmul.f32 1.0, %v546
        %v548 = vrcp.pop %v534
        %v549 = vmul.f32 1.0, %v548
        %v550 = vrcp.pop %v535
        %v551 = vmul.f32 1.0, %v550
        %v552 = vmul.f32 %v537, 1.0614054
        %v553 = vmul.f32 %v539, 1.0614054
        %v554 = vmul.f32 %v541, 1.0614054
        %v555 = vmul.f32 %v543, 1.0614054
        %v556 = vmul.f32 %v545, 1.0614054
        %v557 = vmul.f32 %v547, 1.0614054
        %v558 = vmul.f32 %v549, 1.0614054
        %v559 = vmul.f32 %v551, 1.0614054
        %v560 = vadd.f32 %v552, -1.4531521
        %v561 = vadd.f32 %v553, -1.4531521
        %v562 = vadd.f32 %v554, -1.4531521
        %v563 = vadd.f32 %v555, -1.4531521
        %v564 = vadd.f32 %v556, -1.4531521
        %v565 = vadd.f32 %v557, -1.4531521
        %v566 = vadd.f32 %v558, -1.4531521
        %v567 = vadd.f32 %v559, -1.4531521
        %v568 = vmul.f32 %v537, %v560
        %v569 = vmul.f32 %v539, %v561
        %v570 = vmul.f32 %v541, %v562
        %v571 = vmul.f32 %v543, %v563
        %v572 = vmul.f32 %v545, %v564
        %v573 = vmul.f32 %v547, %v565
        %v574 = vmul.f32 %v549, %v566
        %v575 = vmul.f32 %v551, %v567
        %v576 = vadd.f32 %v568, 1.4214138
        %v577 = vadd.f32 %v569, 1.4214138
        %v578 = vadd.f32 %v570, 1.4214138
        %v579 = vadd.f32 %v571, 1.4214138
        %v580 = vadd.f32 %v572, 1.4214138
        %v581 = vadd.f32 %v573, 1.4214138
        %v582 = vadd.f32 %v574, 1.4214138
        %v583 = vadd.f32 %v575, 1.4214138
        %v584 = vmul.f32 %v537, %v576
        %v585 = vmul.f32 %v539, %v577
        %v586 = vmul.f32 %v541, %v578
        %v587 = vmul.f32 %v543, %v579
        %v588 = vmul.f32 %v545, %v580
        %v589 = vmul.f32 %v547, %v581
        %v590 = vmul.f32 %v549, %v582
        %v591 = vmul.f32 %v551, %v583
        %v592 = vadd.f32 %v584, -0.28449672
        %v593 = vadd.f32 %v585, -0.28449672
        %v594 = vadd.f32 %v586, -0.28449672
        %v595 = vadd.f32 %v587, -0.28449672
        %v596 = vadd.f32 %v588, -0.28449672
        %v597 = vadd.f32 %v589, -0.28449672
        %v598 = vadd.f32 %v590, -0.28449672
        %v599 = vadd.f32 %v591, -0.28449672
        %v600 = vmul.f32 %v537, %v592
        %v601 = vmul.f32 %v539, %v593
        %v602 = vmul.f32 %v541, %v594
        %v603 = vmul.f32 %v543, %v595
        %v604 = vmul.f32 %v545, %v596
        %v605 = vmul.f32 %v547, %v597
        %v606 = vmul.f32 %v549, %v598
        %v607 = vmul.f32 %v551, %v599
        %v608 = vadd.f32 %v600, 0.2548296
        %v609 = vadd.f32 %v601, 0.2548296
        %v610 = vadd.f32 %v602, 0.2548296
        %v611 = vadd.f32 %v603, 0.2548296
        %v612 = vadd.f32 %v604, 0.2548296
        %v613 = vadd.f32 %v605, 0.2548296
        %v614 = vadd.f32 %v606, 0.2548296
        %v615 = vadd.f32 %v607, 0.2548296
        %v616 = vmul.f32 %v537, %v608
        %v617 = vmul.f32 %v539, %v609
        %v618 = vmul.f32 %v541, %v610
        %v619 = vmul.f32 %v543, %v611
        %v620 = vmul.f32 %v545, %v612
        %v621 = vmul.f32 %v547, %v613
        %v622 = vmul.f32 %v549, %v614
        %v623 = vmul.f32 %v551, %v615
        %v624 = vsub.f32 0.0, %v512
        %v625 = vsub.f32 0.0, %v513
        %v626 = vsub.f32 0.0, %v514
        %v627 = vsub.f32 0.0, %v515
        %v628 = vsub.f32 0.0, %v516
        %v629 = vsub.f32 0.0, %v517
        %v630 = vsub.f32 0.0, %v518
        %v631 = vsub.f32 0.0, %v519
        %v632 = vmul.f32 %v624, %v512
        %v633 = vmul.f32 %v625, %v513
        %v634 = vmul.f32 %v626, %v514
        %v635 = vmul.f32 %v627, %v515
        %v636 = vmul.f32 %v628, %v516
        %v637 = vmul.f32 %v629, %v517
        %v638 = vmul.f32 %v630, %v518
        %v639 = vmul.f32 %v631, %v519
        %v640 = vmul.f32 %v632, 1.442695
        %v641 = vpow.pop %v640
        %v642 = vmul.f32 %v633, 1.442695
        %v643 = vpow.pop %v642
        %v644 = vmul.f32 %v634, 1.442695
        %v645 = vpow.pop %v644
        %v646 = vmul.f32 %v635, 1.442695
        %v647 = vpow.pop %v646
        %v648 = vmul.f32 %v636, 1.442695
        %v649 = vpow.pop %v648
        %v650 = vmul.f32 %v637, 1.442695
        %v651 = vpow.pop %v650
        %v652 = vmul.f32 %v638, 1.442695
        %v653 = vpow.pop %v652
        %v654 = vmul.f32 %v639, 1.442695
        %v655 = vpow.pop %v654
        %v656 = vmul.f32 %v616, %v641
        %v657 = vmul.f32 %v617, %v643
        %v658 = vmul.f32 %v618, %v645
        %v659 = vmul.f32 %v619, %v647
        %v660 = vmul.f32 %v620, %v649
        %v661 = vmul.f32 %v621, %v651
        %v662 = vmul.f32 %v622, %v653
        %v663 = vmul.f32 %v623, %v655
        %v664 = vsub.f32 1.0, %v656
        %v665 = vsub.f32 1.0, %v657
        %v666 = vsub.f32 1.0, %v658
        %v667 = vsub.f32 1.0, %v659
        %v668 = vsub.f32 1.0, %v660
        %v669 = vsub.f32 1.0, %v661
        %v670 = vsub.f32 1.0, %v662
        %v671 = vsub.f32 1.0, %v663
        %vm672 = vcmp.ge.f32.partialorder %v504, 0.0
        %vm673 = vcmp.ge.f32.partialorder %v505, 0.0
        %vm674 = vcmp.ge.f32.partialorder %v506, 0.0
        %vm675 = vcmp.ge.f32.partialorder %v507, 0.0
        %vm676 = vcmp.ge.f32.partialorder %v508, 0.0
        %vm677 = vcmp.ge.f32.partialorder %v509, 0.0
        %vm678 = vcmp.ge.f32.partialorder %v510, 0.0
        %vm679 = vcmp.ge.f32.partialorder %v511, 0.0
        %v680 = vsub.f32 0.0, %v664
        %v681 = vsub.f32 0.0, %v665
        %v682 = vsub.f32 0.0, %v666
        %v683 = vsub.f32 0.0, %v667
        %v684 = vsub.f32 0.0, %v668
        %v685 = vsub.f32 0.0, %v669
        %v686 = vsub.f32 0.0, %v670
        %v687 = vsub.f32 0.0, %v671
        %v688 = vsel %vm672, %v664, %v680
        %v689 = vsel %vm673, %v665, %v681
        %v690 = vsel %vm674, %v666, %v682
        %v691 = vsel %vm675, %v667, %v683
        %v692 = vsel %vm676, %v668, %v684
        %v693 = vsel %vm677, %v669, %v685
        %v694 = vsel %vm678, %v670, %v686
        %v695 = vsel %vm679, %v671, %v687
        %v696 = vmul.f32 %v466, 0.5
        %v697 = vmul.f32 %v471, 0.5
        %v698 = vmul.f32 %v476, 0.5
        %v699 = vmul.f32 %v481, 0.5
        %v700 = vmul.f32 %v486, 0.5
        %v701 = vmul.f32 %v491, 0.5
        %v702 = vmul.f32 %v496, 0.5
        %v703 = vmul.f32 %v501, 0.5
        %v704 = vadd.f32 %v688, 1.0
        %v705 = vadd.f32 %v689, 1.0
        %v706 = vadd.f32 %v690, 1.0
        %v707 = vadd.f32 %v691, 1.0
        %v708 = vadd.f32 %v692, 1.0
        %v709 = vadd.f32 %v693, 1.0
        %v710 = vadd.f32 %v694, 1.0
        %v711 = vadd.f32 %v695, 1.0
        %v712 = vmul.f32 %v696, %v704
        %v713 = vmul.f32 %v697, %v705
        %v714 = vmul.f32 %v698, %v706
        %v715 = vmul.f32 %v699, %v707
        %v716 = vmul.f32 %v700, %v708
        %v717 = vmul.f32 %v701, %v709
        %v718 = vmul.f32 %v702, %v710
        %v719 = vmul.f32 %v703, %v711
        %v720 = vld [vmem:[#allocation2] sm:$0xff]
        %v721 = vld [vmem:[#allocation2 + $0x8] sm:$0xff]
        %v722 = vld [vmem:[#allocation2 + $0x10] sm:$0xff]
        %v723 = vld [vmem:[#allocation2 + $0x18] sm:$0xff]
        %v724 = vld [vmem:[#allocation2 + $0x20] sm:$0xff]
        %v725 = vld [vmem:[#allocation2 + $0x28] sm:$0xff]
        %v726 = vld [vmem:[#allocation2 + $0x30] sm:$0xff]
        %v727 = vld [vmem:[#allocation2 + $0x38] sm:$0xff]
        %v728 = vld [vmem:[%s334] sm:$0xff]
        %v729 = vld [vmem:[%s334 + $0x8] sm:$0xff]
        %v730 = vld [vmem:[%s334 + $0x10] sm:$0xff]
        %v731 = vld [vmem:[%s334 + $0x18] sm:$0xff]
        %v732 = vld [vmem:[%s334 + $0x20] sm:$0xff]
        %v733 = vld [vmem:[%s334 + $0x28] sm:$0xff]
        %v734 = vld [vmem:[%s334 + $0x30] sm:$0xff]
        %v735 = vld [vmem:[%s334 + $0x38] sm:$0xff]
        %v736 = vld [vmem:[%s334 + $0x40] sm:$0xff]
        %v737 = vld [vmem:[%s334 + $0x48] sm:$0xff]
        %v738 = vld [vmem:[%s334 + $0x50] sm:$0xff]
        %v739 = vld [vmem:[%s334 + $0x58] sm:$0xff]
        %v740 = vld [vmem:[%s334 + $0x60] sm:$0xff]
        %v741 = vld [vmem:[%s334 + $0x68] sm:$0xff]
        %v742 = vld [vmem:[%s334 + $0x70] sm:$0xff]
        %v743 = vld [vmem:[%s334 + $0x78] sm:$0xff]
        %744 = vmatprep.subr.mxu0 0.0
        %745 = vmatpush1.msra.mxu0 %v728
        %746 = vmatprep.subr.mxu0 0.0
        %747 = vmatpush1.msra.mxu0 %v729
        %748 = vmatprep.subr.mxu0 0.0
        %749 = vmatpush1.msra.mxu0 %v730
        %750 = vmatprep.subr.mxu0 0.0
        %751 = vmatpush1.msra.mxu0 %v731
        %752 = vmatprep.subr.mxu0 0.0
        %753 = vmatpush1.msra.mxu0 %v732
        %754 = vmatprep.subr.mxu0 0.0
        %755 = vmatpush1.msra.mxu0 %v733
        %756 = vmatprep.subr.mxu0 0.0
        %757 = vmatpush1.msra.mxu0 %v734
        %758 = vmatprep.subr.mxu0 0.0
        %759 = vmatpush1.msra.mxu0 %v735
        %760 = vmatprep.subr.mxu0 0.0
        %761 = vmatpush1.msra.mxu0 %v736
        %762 = vmatprep.subr.mxu0 0.0
        %763 = vmatpush1.msra.mxu0 %v737
        %764 = vmatprep.subr.mxu0 0.0
        %765 = vmatpush1.msra.mxu0 %v738
        %766 = vmatprep.subr.mxu0 0.0
        %767 = vmatpush1.msra.mxu0 %v739
        %768 = vmatprep.subr.mxu0 0.0
        %769 = vmatpush1.msra.mxu0 %v740
        %770 = vmatprep.subr.mxu0 0.0
        %771 = vmatpush1.msra.mxu0 %v741
        %772 = vmatprep.subr.mxu0 0.0
        %773 = vmatpush1.msra.mxu0 %v742
        %774 = vmatprep.subr.mxu0 0.0
        %775 = vmatpush1.msra.mxu0 %v743
        %776 = vmatprep.subr.mxu0 0.0
        %777 = vmatpush1.msra.mxu0 0.0
        %778 = vmatprep.subr.mxu0 0.0
        %779 = vmatpush1.msra.mxu0 0.0
        %780 = vmatprep.subr.mxu0 0.0
        %781 = vmatpush1.msra.mxu0 0.0
        %782 = vmatprep.subr.mxu0 0.0
        %783 = vmatpush1.msra.mxu0 0.0
        %784 = vmatprep.subr.mxu0 0.0
        %785 = vmatpush1.msra.mxu0 0.0
        %786 = vmatprep.subr.mxu0 0.0
        %787 = vmatpush1.msra.mxu0 0.0
        %788 = vmatprep.subr.mxu0 0.0
        %789 = vmatpush1.msra.mxu0 0.0
        %790 = vmatprep.subr.mxu0 0.0
        %791 = vmatpush1.msra.mxu0 0.0
        %792 = vmatprep.subr.mxu0 0.0
        %793 = vmatpush1.msra.mxu0 0.0
        %794 = vmatprep.subr.mxu0 0.0
        %795 = vmatpush1.msra.mxu0 0.0
        %796 = vmatprep.subr.mxu0 0.0
        %797 = vmatpush1.msra.mxu0 0.0
        %798 = vmatprep.subr.mxu0 0.0
        %799 = vmatpush1.msra.mxu0 0.0
        %800 = vmatprep.subr.mxu0 0.0
        %801 = vmatpush1.msra.mxu0 0.0
        %802 = vmatprep.subr.mxu0 0.0
        %803 = vmatpush1.msra.mxu0 0.0
        %804 = vmatprep.subr.mxu0 0.0
        %805 = vmatpush1.msra.mxu0 0.0
        %806 = vmatprep.subr.mxu0 0.0
        %807 = vmatpush1.msra.mxu0 0.0
        %808 = vmatprep.mubr.f32.mxu0 0.0
        %809 = vmatmul.mubr.f32.gmra.mrb[0].mxu0 %v712
        %v810 = vpop.f32.mrb[0].mxu0
        %v811 = vadd.f32 0.0, %v810
        %v812 = vpop.f32.mrb[0].mxu0
        %813 = vmatprep.mubr.f32.mxu0 0.0
        %814 = vmatmul.mubr.f32.gmra.mrb[0].mxu0 %v713
        %v815 = vpop.f32.mrb[0].mxu0
        %v816 = vadd.f32 0.0, %v815
        %v817 = vpop.f32.mrb[0].mxu0
        %818 = vmatprep.mubr.f32.mxu0 0.0
        %819 = vmatmul.mubr.f32.gmra.mrb[0].mxu0 %v714
        %v820 = vpop.f32.mrb[0].mxu0
        %v821 = vadd.f32 0.0, %v820
        %v822 = vpop.f32.mrb[0].mxu0
        %823 = vmatprep.mubr.f32.mxu0 0.0
        %824 = vmatmul.mubr.f32.gmra.mrb[0].mxu0 %v715
        %v825 = vpop.f32.mrb[0].mxu0
        %v826 = vadd.f32 0.0, %v825
        %v827 = vpop.f32.mrb[0].mxu0
        %828 = vmatprep.mubr.f32.mxu0 0.0
        %829 = vmatmul.mubr.f32.gmra.mrb[0].mxu0 %v716
        %v830 = vpop.f32.mrb[0].mxu0
        %v831 = vadd.f32 0.0, %v830
        %v832 = vpop.f32.mrb[0].mxu0
        %833 = vmatprep.mubr.f32.mxu0 0.0
        %834 = vmatmul.mubr.f32.gmra.mrb[0].mxu0 %v717
        %v835 = vpop.f32.mrb[0].mxu0
        %v836 = vadd.f32 0.0, %v835
        %v837 = vpop.f32.mrb[0].mxu0
        %838 = vmatprep.mubr.f32.mxu0 0.0
        %839 = vmatmul.mubr.f32.gmra.mrb[0].mxu0 %v718
        %v840 = vpop.f32.mrb[0].mxu0
        %v841 = vadd.f32 0.0, %v840
        %v842 = vpop.f32.mrb[0].mxu0
        %843 = vmatprep.mubr.f32.mxu0 0.0
        %844 = vmatmul.mubr.f32.gmra.mrb[0].mxu0 %v719
        %v845 = vpop.f32.mrb[0].mxu0
        %v846 = vadd.f32 0.0, %v845
        %v847 = vpop.f32.mrb[0].mxu0
        %848 = vdwg.mxu0
        %v849 = vadd.f32 %v720, %v811
        %v850 = vadd.f32 %v721, %v816
        %v851 = vadd.f32 %v722, %v821
        %v852 = vadd.f32 %v723, %v826
        %v853 = vadd.f32 %v724, %v831
        %v854 = vadd.f32 %v725, %v836
        %v855 = vadd.f32 %v726, %v841
        %v856 = vadd.f32 %v727, %v846
        %857 = vst.msk [vmem:[#allocation2] sm:$0xff] %vm374, %v849
        %858 = vst.msk [vmem:[#allocation2 + $0x8] sm:$0xff] %vm374, %v850
        %859 = vst.msk [vmem:[#allocation2 + $0x10] sm:$0xff] %vm374, %v851
        %860 = vst.msk [vmem:[#allocation2 + $0x18] sm:$0xff] %vm374, %v852
        %861 = vst.msk [vmem:[#allocation2 + $0x20] sm:$0xff] %vm374, %v853
        %862 = vst.msk [vmem:[#allocation2 + $0x28] sm:$0xff] %vm374, %v854
        %863 = vst.msk [vmem:[#allocation2 + $0x30] sm:$0xff] %vm374, %v855
        %864 = vst.msk [vmem:[#allocation2 + $0x38] sm:$0xff] %vm374, %v856
        %p865 = scmp.eq.s32.totalorder %s21, 1
        // Predicated region
        $region83: #{tpu_custom_call.1} parent=73 // pred_check
          %p866 = pneg %p865
        $region84: #{tpu_custom_call.1} parent=73 // pred_check_branch
          %868 = sbr.rel (%p866) target = $region86
        $region85: #{tpu_custom_call.1} parent=73 // pred_region
          %v869 = vld [vmem:[#allocation2] sm:$0xff]
          %v870 = vld [vmem:[#allocation2 + $0x8] sm:$0xff]
          %v871 = vld [vmem:[#allocation2 + $0x10] sm:$0xff]
          %v872 = vld [vmem:[#allocation2 + $0x18] sm:$0xff]
          %v873 = vld [vmem:[#allocation2 + $0x20] sm:$0xff]
          %v874 = vld [vmem:[#allocation2 + $0x28] sm:$0xff]
          %v875 = vld [vmem:[#allocation2 + $0x30] sm:$0xff]
          %v876 = vld [vmem:[#allocation2 + $0x38] sm:$0xff]
          %v877 = vld [vmem:[%s4] sm:$0x1]
          %v879 = vlaneseq
          %v880 = vshrl.u32 %v879, 7
          %v881 = vsub.s32 0, %v880
          %v882 = vrot.slane %v877, %v881
          %v884 = vadd.f32 %v869, %v882
          %v885 = vadd.f32 %v870, %v882
          %v886 = vadd.f32 %v871, %v882
          %v887 = vadd.f32 %v872, %v882
          %v888 = vadd.f32 %v873, %v882
          %v889 = vadd.f32 %v874, %v882
          %v890 = vadd.f32 %v875, %v882
          %v891 = vadd.f32 %v876, %v882
          %892 = vst.msk [vmem:[%s340] sm:$0xff] %vm374, %v884
          %893 = vst.msk [vmem:[%s340 + $0x8] sm:$0xff] %vm374, %v885
          %894 = vst.msk [vmem:[%s340 + $0x10] sm:$0xff] %vm374, %v886
          %895 = vst.msk [vmem:[%s340 + $0x18] sm:$0xff] %vm374, %v887
          %896 = vst.msk [vmem:[%s340 + $0x20] sm:$0xff] %vm374, %v888
          %897 = vst.msk [vmem:[%s340 + $0x28] sm:$0xff] %vm374, %v889
          %898 = vst.msk [vmem:[%s340 + $0x30] sm:$0xff] %vm374, %v890
          %899 = vst.msk [vmem:[%s340 + $0x38] sm:$0xff] %vm374, %v891
        $region86: #{tpu_custom_call.1} parent=73 // pred_fallthru
          _
        %s900 = smul.u32 8, %s20
        %p901 = scmp.lt.s32.totalorder %s900, 15
        %s902 = scalar_select %p901, %s900, 15
        %s903 = smul.addr %s902, 8
        %s904 = scalar_lea.vmem %s5, %s903
        // Predicated region
        $region87: #{tpu_custom_call.1} parent=73 // pred_check
          %p905 = pneg %p171
        $region88: #{tpu_custom_call.1} parent=73 // pred_check_branch
          %907 = sbr.rel (%p905) target = $region90
        $region89: #{tpu_custom_call.1} parent=73 // pred_region
          %s908 = smul.u32 8, %s20
        $region90: #{tpu_custom_call.1} parent=73 // pred_fallthru
          _
      $region74: #{tpu_custom_call.1} parent=5 // pred_fallthru
        _
      %p909 = scmp.le.s32.totalorder 2, %s11
      // Predicated region
      $region91: #{tpu_custom_call.1} parent=5 // pred_check
        %p910 = pneg %p909
      $region92: #{tpu_custom_call.1} parent=5 // pred_check_branch
        %912 = sbr.rel (%p910) target = $region94
      $region93: #{tpu_custom_call.1} parent=5 // pred_region
        %s913 = ssub.s32 %s11, 2
        // Predicated region
        $region95: #{tpu_custom_call.1} parent=93 // pred_check
          %p914 = pneg %p177
        $region96: #{tpu_custom_call.1} parent=93 // pred_check_branch
          %916 = sbr.rel (%p914) target = $region98
        $region97: #{tpu_custom_call.1} parent=93 // pred_region
          %s917 = smul.u32 8, %s22
          %p918 = scmp.lt.s32.totalorder %s917, 15
          %s919 = scalar_select %p918, %s917, 15
          %s920 = smul.addr %s919, 8
          %s921 = scalar_lea.vmem %s5, %s920
        $region98: #{tpu_custom_call.1} parent=93 // pred_fallthru
          _
      $region94: #{tpu_custom_call.1} parent=5 // pred_fallthru
        _
    $region6: #{tpu_custom_call.1} parent=1 // loop_footer
      %s15 = sadd.s32 1, %s11
    $region7: #{tpu_custom_call.1} parent=1 // loop_footer_branch
      %10 = sbr.rel target = $region3
    $region8: #{tpu_custom_call.1} parent=1 // loop_exit
      _

</llo_original>
